<compile_context>
chip_gen: v5e
topology: v5e:2x2
jax: 0.10.0
libtpu: 0.0.40
codegen_flags: <defaults>
</compile_context>

<pallas_src>
import jax
import jax.numpy as jnp
from jax.experimental import pallas as pl
from jax.experimental.pallas import tpu as pltpu

LANE = 128  # TPU lane width; logits / hidden output and pads target this.


def rnn_actor_kernel(x_ref, h_ref, w1_ref, w_gru_ref, w2_ref, b_ref, out_ref):
    """Fused fc1 -> ReLU -> GRUCell -> fc2 step.

    x_ref    : (B, D)         f32
    h_ref    : (B, H)         f32
    w1_ref   : (D, F)         bf16
    w_gru_ref: (F+H, 4H)      bf16   block layout [[Wir|Wiz|Win|0],[Whr|Whz|0|Whn]]
    w2_ref   : (H, LANE)      bf16   (n_actions columns, zero-padded to LANE)
    b_ref    : (3, BW)        f32    rows: b1 | [bir+bhr, biz+bhz, bin, bhn] | b2
    out_ref  : (B, 2*LANE)    f32    [:, :LANE] = padded logits, [:, LANE:] = padded h'
    """
    x = x_ref[...]
    h = h_ref[...]

    F = w1_ref.shape[1]
    H = h.shape[1]
    B = x.shape[0]
    bf = w1_ref.dtype

    b_all = b_ref[...]
    b1 = b_all[0:1, :F]            # fc1 bias
    b_gru = b_all[1:2, :4 * H]     # [b_r | b_z | b_in | b_hn]
    b2 = b_all[2:3, :LANE]         # fc2 bias (zero in padded columns)

    # fc1 + ReLU (bf16 MXU operands, f32 accumulate, f32 elementwise).
    fc1 = jnp.dot(x.astype(bf), w1_ref[...], preferred_element_type=jnp.float32) + b1
    fc1 = jnp.maximum(fc1, 0.0)

    # Single fused GRU matmul: [fc1 | h] @ W_gru -> (B, 4H) with columns
    # [gi_r+gh_r | gi_z+gh_z | gi_n | gh_n]; add all gate biases in one op.
    xh = jnp.concatenate([fc1, h], axis=1).astype(bf)          # (B, F+H)
    g = jnp.dot(xh, w_gru_ref[...], preferred_element_type=jnp.float32) + b_gru

    r = jax.nn.sigmoid(g[:, 0:H])
    z = jax.nn.sigmoid(g[:, H:2 * H])
    n = jnp.tanh(g[:, 2 * H:3 * H] + r * g[:, 3 * H:4 * H])
    h_new = (1.0 - z) * n + z * h

    # fc2 against the LANE-padded weight -> logits already lane-dense.
    logits = jnp.dot(h_new.astype(bf), w2_ref[...], preferred_element_type=jnp.float32) + b2

    # Pack both results into one lane-dense slab and do a single full store.
    if H < LANE:
        h_out = jnp.concatenate([h_new, jnp.zeros((B, LANE - H), jnp.float32)], axis=1)
    else:
        h_out = h_new
    out_ref[...] = jnp.concatenate([logits, h_out], axis=1)


def pack_params(p):
    """Pack per-gate f32 params into kernel-ready fused / padded arrays."""
    bf = jnp.bfloat16
    F = p["w1"].shape[1]
    H = p["whr"].shape[0]
    A = p["w2"].shape[1]
    assert F <= LANE and H <= LANE and A <= LANE, "this packing assumes dims <= 128"

    BW = max(4 * H, F, A, LANE)

    def pad_row(v):
        v = v.reshape(1, -1)
        return jnp.pad(v, ((0, 0), (0, BW - v.shape[1])))

    # Block GRU weight: [[Wir|Wiz|Win|0], [Whr|Whz|0|Whn]]  -> (F+H, 4H)
    zf = jnp.zeros((F, H), jnp.float32)
    zh = jnp.zeros((H, H), jnp.float32)
    top = jnp.concatenate([p["wir"], p["wiz"], p["win"], zf], axis=1)
    bot = jnp.concatenate([p["whr"], p["whz"], zh, p["whn"]], axis=1)
    w_gru = jnp.concatenate([top, bot], axis=0)                       # (F+H, 4H)

    w2p = jnp.pad(p["w2"], ((0, 0), (0, LANE - A)))                   # (H, LANE)

    b_gru_row = jnp.concatenate(
        [p["bir"] + p["bhr"], p["biz"] + p["bhz"], p["bin"], p["bhn"]], axis=1
    )                                                                  # (1, 4H)

    b_pack = jnp.concatenate(
        [pad_row(p["b1"]), pad_row(b_gru_row), pad_row(p["b2"])], axis=0
    ).astype(jnp.float32)                                              # (3, BW)

    return {
        "w1": p["w1"].astype(bf),
        "w_gru": w_gru.astype(bf),
        "w2": w2p.astype(bf),
        "b": b_pack,
        "n_actions": A,
        "rnn_hidden_dim": H,
    }


def rnn_actor_forward(inputs, hidden_state, packed):
    """One RNNActorModel.forward step. Returns (logits, new_hidden)."""
    w1 = packed["w1"]
    w_gru = packed["w_gru"]
    w2p = packed["w2"]
    b_pack = packed["b"]
    A = packed["n_actions"]
    H = packed["rnn_hidden_dim"]

    B0 = inputs.shape[0]
    x = inputs.astype(jnp.float32)
    if hidden_state is None:
        h = jnp.zeros((B0, H), dtype=jnp.float32)
    else:
        h = hidden_state.reshape(-1, H).astype(jnp.float32)

    # Pad batch to a multiple of 8 (f32 sublane) explicitly rather than relying
    # on implicit compiler padding.
    pad_b = (-B0) % 8
    if pad_b:
        x = jnp.pad(x, ((0, pad_b), (0, 0)))
        h = jnp.pad(h, ((0, pad_b), (0, 0)))
    B = B0 + pad_b

    vmem = pl.BlockSpec(memory_space=pltpu.MemorySpace.VMEM)
    slab = pl.pallas_call(
        rnn_actor_kernel,
        out_shape=jax.ShapeDtypeStruct((B, 2 * LANE), jnp.float32),
        in_specs=[vmem] * 6,
        out_specs=vmem,
    )(x, h, w1, w_gru, w2p, b_pack)

    logits = slab[:B0, :A]
    h_new = slab[:B0, LANE:LANE + H]
    return logits, h_new


def init_params(key, input_dim, fc_hidden_dim, rnn_hidden_dim, n_actions):
    """Deterministic synthetic parameter init (shapes match the PyTorch module,
    stored transposed so the kernel computes x @ W + b)."""
    keys = jax.random.split(key, 16)
    s = 0.1

    def mk(k, shape):
        return (s * jax.random.normal(k, shape)).astype(jnp.float32)

    return {
        # fc1: Linear(input_dim -> fc_hidden_dim)
        "w1": mk(keys[0], (input_dim, fc_hidden_dim)),
        "b1": mk(keys[1], (1, fc_hidden_dim)),
        # GRUCell(fc_hidden_dim -> rnn_hidden_dim), gates r/z/n
        "wir": mk(keys[2], (fc_hidden_dim, rnn_hidden_dim)),
        "wiz": mk(keys[3], (fc_hidden_dim, rnn_hidden_dim)),
        "win": mk(keys[4], (fc_hidden_dim, rnn_hidden_dim)),
        "bir": mk(keys[5], (1, rnn_hidden_dim)),
        "biz": mk(keys[6], (1, rnn_hidden_dim)),
        "bin": mk(keys[7], (1, rnn_hidden_dim)),
        "whr": mk(keys[8], (rnn_hidden_dim, rnn_hidden_dim)),
        "whz": mk(keys[9], (rnn_hidden_dim, rnn_hidden_dim)),
        "whn": mk(keys[10], (rnn_hidden_dim, rnn_hidden_dim)),
        "bhr": mk(keys[11], (1, rnn_hidden_dim)),
        "bhz": mk(keys[12], (1, rnn_hidden_dim)),
        "bhn": mk(keys[13], (1, rnn_hidden_dim)),
        # fc2: Linear(rnn_hidden_dim -> n_actions)
        "w2": mk(keys[14], (rnn_hidden_dim, n_actions)),
        "b2": mk(keys[15], (1, n_actions)),
    }


def reference_forward(x, h, p):
    """Pure-JAX reference mirroring PyTorch semantics with the same bf16-MXU /
    f32-accumulate / f32-elementwise policy as the kernel."""
    bf = jnp.bfloat16

    def mm(a, w):
        return jnp.dot(a.astype(bf), w.astype(bf), preferred_element_type=jnp.float32)

    fc1 = jnp.maximum(mm(x, p["w1"]) + p["b1"], 0.0)
    r = jax.nn.sigmoid(mm(fc1, p["wir"]) + p["bir"] + mm(h, p["whr"]) + p["bhr"])
    z = jax.nn.sigmoid(mm(fc1, p["wiz"]) + p["biz"] + mm(h, p["whz"]) + p["bhz"])
    n = jnp.tanh(mm(fc1, p["win"]) + p["bin"] + r * (mm(h, p["whn"]) + p["bhn"]))
    h_new = (1.0 - z) * n + z * h
    out = mm(h_new, p["w2"]) + p["b2"]
    return out, h_new


if __name__ == "__main__":
    # Small shapes implied by the module: inputs = obs + n_actions + n_agents.
    batch = 8
    input_dim = 32        # actor_input_dim
    fc_hidden_dim = 64
    rnn_hidden_dim = 64
    n_actions = 16

    key = jax.random.PRNGKey(0)
    k_params, k_x, k_h = jax.random.split(key, 3)

    params = init_params(k_params, input_dim, fc_hidden_dim, rnn_hidden_dim, n_actions)
    packed = pack_params(params)

    x = jax.random.normal(k_x, (batch, input_dim), dtype=jnp.float32)
    h0 = jax.random.normal(k_h, (batch, rnn_hidden_dim), dtype=jnp.float32)

    # Step with an explicit hidden state.
    out, h_new = rnn_actor_forward(x, h0, packed)
    out = jax.block_until_ready(out)
    h_new = jax.block_until_ready(h_new)

    out_ref, h_ref = reference_forward(x, h0, params)
    assert out.shape == (batch, n_actions) and h_new.shape == (batch, rnn_hidden_dim)
    assert jnp.allclose(out, out_ref, atol=1e-3, rtol=1e-3)
    assert jnp.allclose(h_new, h_ref, atol=1e-3, rtol=1e-3)

    # Step with hidden_state=None (zero-init path of the module).
    out0, hn0 = rnn_actor_forward(x, None, packed)
    out0 = jax.block_until_ready(out0)
    hn0 = jax.block_until_ready(hn0)
    out0_ref, hn0_ref = reference_forward(x, jnp.zeros_like(h0), params)
    assert jnp.allclose(out0, out0_ref, atol=1e-3, rtol=1e-3)
    assert jnp.allclose(hn0, hn0_ref, atol=1e-3, rtol=1e-3)

    print("KERNEL_OK")
</pallas_src>

<mosaic_0001>
module attributes {stable_mosaic.version = 11 : i64} {
  func.func @rnn_actor_kernel(%arg0: memref<8x32xf32, #tpu.memory_space<vmem>>, %arg1: memref<8x64xf32, #tpu.memory_space<vmem>>, %arg2: memref<32x64xbf16, #tpu.memory_space<vmem>>, %arg3: memref<128x256xbf16, #tpu.memory_space<vmem>>, %arg4: memref<64x128xbf16, #tpu.memory_space<vmem>>, %arg5: memref<3x256xf32, #tpu.memory_space<vmem>>, %arg6: memref<8x256xf32, #tpu.memory_space<vmem>>) attributes {dimension_semantics = [], scalar_prefetch = 0 : i64, scratch_operands = 0 : i64, tpu.core_type = #tpu.core_type<tc>} {
    %c0 = arith.constant 0 : index
    %c0_0 = arith.constant 0 : index
    %0 = vector.load %arg0[%c0, %c0_0] : memref<8x32xf32, #tpu.memory_space<vmem>>, vector<8x32xf32>
    %c0_1 = arith.constant 0 : index
    %c0_2 = arith.constant 0 : index
    %1 = vector.load %arg1[%c0_1, %c0_2] : memref<8x64xf32, #tpu.memory_space<vmem>>, vector<8x64xf32>
    %c0_3 = arith.constant 0 : index
    %c0_4 = arith.constant 0 : index
    %2 = vector.load %arg5[%c0_3, %c0_4] : memref<3x256xf32, #tpu.memory_space<vmem>>, vector<3x256xf32>
    %3 = vector.extract_strided_slice %2 {offsets = [0, 0], sizes = [1, 64], strides = [1, 1]} : vector<3x256xf32> to vector<1x64xf32>
    %4 = vector.extract_strided_slice %2 {offsets = [1, 0], sizes = [1, 256], strides = [1, 1]} : vector<3x256xf32> to vector<1x256xf32>
    %5 = vector.extract_strided_slice %2 {offsets = [2, 0], sizes = [1, 128], strides = [1, 1]} : vector<3x256xf32> to vector<1x128xf32>
    %6 = arith.truncf %0 : vector<8x32xf32> to vector<8x32xbf16>
    %c0_5 = arith.constant 0 : index
    %c0_6 = arith.constant 0 : index
    %7 = vector.load %arg2[%c0_5, %c0_6] : memref<32x64xbf16, #tpu.memory_space<vmem>>, vector<32x64xbf16>
    %cst = arith.constant dense<0.000000e+00> : vector<8x64xf32>
    %8 = tpu.matmul %6, %7, %cst {dimension_numbers = #tpu.dot_dimension_numbers<[1], [0], [0], [1], [0, 0, 1, 1], [], []>} : vector<8x32xbf16>, vector<32x64xbf16>, vector<8x64xf32> -> vector<8x64xf32>
    %9 = vector.broadcast %3 : vector<1x64xf32> to vector<8x64xf32>
    %10 = arith.addf %8, %9 : vector<8x64xf32>
    %cst_7 = arith.constant 0.000000e+00 : f32
    %11 = vector.broadcast %cst_7 : f32 to vector<8x64xf32>
    %12 = arith.maximumf %10, %11 : vector<8x64xf32>
    %13 = tpu.concatenate %12, %1 in 1 : vector<8x64xf32>, vector<8x64xf32> -> vector<8x128xf32>
    %14 = arith.truncf %13 : vector<8x128xf32> to vector<8x128xbf16>
    %c0_8 = arith.constant 0 : index
    %c0_9 = arith.constant 0 : index
    %15 = vector.load %arg3[%c0_8, %c0_9] : memref<128x256xbf16, #tpu.memory_space<vmem>>, vector<128x256xbf16>
    %cst_10 = arith.constant dense<0.000000e+00> : vector<8x256xf32>
    %16 = tpu.matmul %14, %15, %cst_10 {dimension_numbers = #tpu.dot_dimension_numbers<[1], [0], [0], [1], [0, 0, 1, 1], [], []>} : vector<8x128xbf16>, vector<128x256xbf16>, vector<8x256xf32> -> vector<8x256xf32>
    %17 = vector.broadcast %4 : vector<1x256xf32> to vector<8x256xf32>
    %18 = arith.addf %16, %17 : vector<8x256xf32>
    %19 = vector.extract_strided_slice %18 {offsets = [0, 0], sizes = [8, 64], strides = [1, 1]} : vector<8x256xf32> to vector<8x64xf32>
    %20 = arith.negf %19 : vector<8x64xf32>
    %21 = math.exp %20 : vector<8x64xf32>
    %cst_11 = arith.constant 1.000000e+00 : f32
    %22 = vector.broadcast %cst_11 : f32 to vector<8x64xf32>
    %23 = arith.addf %22, %21 : vector<8x64xf32>
    %24 = arith.divf %22, %23 : vector<8x64xf32>
    %25 = vector.extract_strided_slice %18 {offsets = [0, 64], sizes = [8, 64], strides = [1, 1]} : vector<8x256xf32> to vector<8x64xf32>
    %26 = arith.negf %25 : vector<8x64xf32>
    %27 = math.exp %26 : vector<8x64xf32>
    %cst_12 = arith.constant 1.000000e+00 : f32
    %28 = vector.broadcast %cst_12 : f32 to vector<8x64xf32>
    %29 = arith.addf %28, %27 : vector<8x64xf32>
    %30 = arith.divf %28, %29 : vector<8x64xf32>
    %31 = vector.extract_strided_slice %18 {offsets = [0, 128], sizes = [8, 64], strides = [1, 1]} : vector<8x256xf32> to vector<8x64xf32>
    %32 = vector.extract_strided_slice %18 {offsets = [0, 192], sizes = [8, 64], strides = [1, 1]} : vector<8x256xf32> to vector<8x64xf32>
    %33 = arith.mulf %24, %32 : vector<8x64xf32>
    %34 = arith.addf %31, %33 : vector<8x64xf32>
    %35 = math.tanh %34 : vector<8x64xf32>
    %cst_13 = arith.constant 1.000000e+00 : f32
    %36 = vector.broadcast %cst_13 : f32 to vector<8x64xf32>
    %37 = arith.subf %36, %30 : vector<8x64xf32>
    %38 = arith.mulf %37, %35 : vector<8x64xf32>
    %39 = arith.mulf %30, %1 : vector<8x64xf32>
    %40 = arith.addf %38, %39 : vector<8x64xf32>
    %41 = arith.truncf %40 : vector<8x64xf32> to vector<8x64xbf16>
    %c0_14 = arith.constant 0 : index
    %c0_15 = arith.constant 0 : index
    %42 = vector.load %arg4[%c0_14, %c0_15] : memref<64x128xbf16, #tpu.memory_space<vmem>>, vector<64x128xbf16>
    %cst_16 = arith.constant dense<0.000000e+00> : vector<8x128xf32>
    %43 = tpu.matmul %41, %42, %cst_16 {dimension_numbers = #tpu.dot_dimension_numbers<[1], [0], [0], [1], [0, 0, 1, 1], [], []>} : vector<8x64xbf16>, vector<64x128xbf16>, vector<8x128xf32> -> vector<8x128xf32>
    %44 = vector.broadcast %5 : vector<1x128xf32> to vector<8x128xf32>
    %45 = arith.addf %43, %44 : vector<8x128xf32>
    %cst_17 = arith.constant 0.000000e+00 : f32
    %46 = vector.broadcast %cst_17 : f32 to vector<8x64xf32>
    %47 = tpu.concatenate %40, %46 in 1 : vector<8x64xf32>, vector<8x64xf32> -> vector<8x128xf32>
    %48 = tpu.concatenate %45, %47 in 1 : vector<8x128xf32>, vector<8x128xf32> -> vector<8x256xf32>
    %c0_18 = arith.constant 0 : index
    %c0_19 = arith.constant 0 : index
    %49 = vector.load %arg6[%c0_18, %c0_19] : memref<8x256xf32, #tpu.memory_space<vmem>>, vector<8x256xf32>
    tpu.vector_store %arg6[%c0_18, %c0_19], %48 {strides = array<i32>} : memref<8x256xf32, #tpu.memory_space<vmem>>, vector<8x256xf32>,
    return
  }
}

</mosaic_0001>

<llo_original>
// kernel: tpu_custom_call.1
$region0: #{tpu_custom_call.1}
  #allocation0 [shape = 'u32[]', space=smem, size = 0x4, offset = 0x4, fixed_abs, tag = 'smem constant byte address 0x4 - core index']
  #allocation1 [shape = 'u32[72,128]{1,0:T(1,128)}', space=vmem, size = 0x9000, scoped, tag = 'internal scratch']
  %s0 = inlined_call_operand.hbm [shape: f32[8,32], index: 0, kind: input, shape index: {}]
  %s1 = inlined_call_operand.hbm [shape: f32[8,64], index: 1, kind: input, shape index: {}]
  %s2 = inlined_call_operand.hbm [shape: bf16[32,64], index: 2, kind: input, shape index: {}]
  %s3 = inlined_call_operand.hbm [shape: bf16[128,256], index: 3, kind: input, shape index: {}]
  %s4 = inlined_call_operand.hbm [shape: bf16[64,128], index: 4, kind: input, shape index: {}]
  %s5 = inlined_call_operand.hbm [shape: f32[3,256], index: 5, kind: input, shape index: {}]
  %s6 = inlined_call_operand.hbm [shape: f32[8,256], index: 6, kind: output, shape index: {}]
  %s7 = sld [smem:[#allocation0]]
  $region58: #{tpu_custom_call.1} parent=0
    _
  %s9 = ssub.s32 1, %s7
  %s10 = scalar_select 0, %s9, %s7
  $region1: #{tpu_custom_call.1} parent=0
    #allocation2 [shape = 'u8[4096]{0}', space=vmem, size = 0x1000, scoped, tag = 'input window, operand 0, single buffered']
    #allocation3 [shape = 's32[1]{0}', space=sflag, size = 0x4, scoped, tag = 'scoped memory for tpu_custom_call.1']
    #allocation4 [shape = 's32[1]{0}', space=sflag, size = 0x4, scoped, tag = 'scoped memory for tpu_custom_call.1']
    #allocation5 [shape = 'u8[4096]{0}', space=vmem, size = 0x1000, scoped, tag = 'input window, operand 1, single buffered']
    #allocation6 [shape = 's32[1]{0}', space=sflag, size = 0x4, scoped, tag = 'scoped memory for tpu_custom_call.1']
    #allocation7 [shape = 'u8[8192]{0}', space=vmem, size = 0x2000, scoped, tag = 'input window, operand 2, single buffered']
    #allocation8 [shape = 'u8[65536]{0}', space=vmem, size = 0x10000, scoped, tag = 'input window, operand 3, single buffered']
    #allocation9 [shape = 's32[1]{0}', space=sflag, size = 0x4, scoped, tag = 'scoped memory for tpu_custom_call.1']
    #allocation10 [shape = 'u8[16384]{0}', space=vmem, size = 0x4000, scoped, tag = 'input window, operand 4, single buffered']
    #allocation11 [shape = 'u8[4096]{0}', space=vmem, size = 0x1000, scoped, tag = 'input window, operand 5, single buffered']
    #allocation12 [shape = 's32[1]{0}', space=sflag, size = 0x4, scoped, tag = 'scoped memory for tpu_custom_call.1']
    #allocation13 [shape = 'u8[8192]{0}', space=vmem, size = 0x2000, scoped, tag = 'output window, operand 0, single buffered']
    %11 = vsyncpa [#allocation3], 0
    %12 = vsyncpa [#allocation6], 0
    %13 = vsyncpa [#allocation9], 0
    %14 = vsyncpa [#allocation12], 0
    %15 = vsyncpa [#allocation4], 0
    // Predicated region
    $region2: #{tpu_custom_call.1} parent=1 // pred_check
      _
    $region3: #{tpu_custom_call.1} parent=1 // pred_check_branch
      %17 = sbr.rel (0) target = $region5
    $region4: #{tpu_custom_call.1} parent=1 // pred_region
      %19 = vsyncadd [#allocation3], 0
      %s21 = sshll.u32 %s0, 4
      %s22 = int_to_ptr.hbm [resolvable:$true] %s21
      %s23 = sshll.u32 [#allocation2], 4
      %s24 = int_to_ptr.vmem [resolvable:$true] %s23
      %26 = dma.hbm_to_vmem [thread:$0]  %s22, 128, %s24, [#allocation3]
    $region5: #{tpu_custom_call.1} parent=1 // pred_fallthru
      _
    // Predicated region
    $region6: #{tpu_custom_call.1} parent=1 // pred_check
      _
    $region7: #{tpu_custom_call.1} parent=1 // pred_check_branch
      %28 = sbr.rel (0) target = $region9
    $region8: #{tpu_custom_call.1} parent=1 // pred_region
      %30 = vsyncadd [#allocation6], 0
      %s32 = sshll.u32 %s1, 4
      %s33 = int_to_ptr.hbm [resolvable:$true] %s32
      %s34 = sshll.u32 [#allocation5], 4
      %s35 = int_to_ptr.vmem [resolvable:$true] %s34
      %37 = dma.hbm_to_vmem [thread:$0]  %s33, 128, %s35, [#allocation6]
    $region9: #{tpu_custom_call.1} parent=1 // pred_fallthru
      _
    // Predicated region
    $region10: #{tpu_custom_call.1} parent=1 // pred_check
      _
    $region11: #{tpu_custom_call.1} parent=1 // pred_check_branch
      %39 = sbr.rel (0) target = $region13
    $region12: #{tpu_custom_call.1} parent=1 // pred_region
      %41 = vsyncadd [#allocation6], 0
      %s42 = sshll.u32 %s2, 4
      %s43 = int_to_ptr.hbm [resolvable:$true] %s42
      %s44 = sshll.u32 [#allocation7], 4
      %s45 = int_to_ptr.vmem [resolvable:$true] %s44
      %50 = dma.hbm_to_vmem [thread:$0]  %s43, 256, %s45, [#allocation6], 64, 64, 4
    $region13: #{tpu_custom_call.1} parent=1 // pred_fallthru
      _
    // Predicated region
    $region14: #{tpu_custom_call.1} parent=1 // pred_check
      _
    $region15: #{tpu_custom_call.1} parent=1 // pred_check_branch
      %52 = sbr.rel (0) target = $region17
    $region16: #{tpu_custom_call.1} parent=1 // pred_region
      %54 = vsyncadd [#allocation9], 0
      %s55 = sshll.u32 %s3, 4
      %s56 = int_to_ptr.hbm [resolvable:$true] %s55
      %s57 = sshll.u32 [#allocation8], 4
      %s58 = int_to_ptr.vmem [resolvable:$true] %s57
      %63 = dma.hbm_to_vmem [thread:$0]  %s56, 2048, %s58, [#allocation9], 128, 128, 8
    $region17: #{tpu_custom_call.1} parent=1 // pred_fallthru
      _
    // Predicated region
    $region18: #{tpu_custom_call.1} parent=1 // pred_check
      _
    $region19: #{tpu_custom_call.1} parent=1 // pred_check_branch
      %65 = sbr.rel (0) target = $region21
    $region20: #{tpu_custom_call.1} parent=1 // pred_region
      %67 = vsyncadd [#allocation9], 0
      %s68 = sshll.u32 %s4, 4
      %s69 = int_to_ptr.hbm [resolvable:$true] %s68
      %s70 = sshll.u32 [#allocation10], 4
      %s71 = int_to_ptr.vmem [resolvable:$true] %s70
      %76 = dma.hbm_to_vmem [thread:$0]  %s69, 512, %s71, [#allocation9], 64, 64, 4
    $region21: #{tpu_custom_call.1} parent=1 // pred_fallthru
      _
    // Predicated region
    $region22: #{tpu_custom_call.1} parent=1 // pred_check
      _
    $region23: #{tpu_custom_call.1} parent=1 // pred_check_branch
      %78 = sbr.rel (0) target = $region25
    $region24: #{tpu_custom_call.1} parent=1 // pred_region
      %80 = vsyncadd [#allocation12], 0
      %s82 = sshll.u32 %s5, 4
      %s83 = int_to_ptr.hbm [resolvable:$true] %s82
      %s84 = sshll.u32 [#allocation11], 4
      %s85 = int_to_ptr.vmem [resolvable:$true] %s84
      %87 = dma.hbm_to_vmem [thread:$0]  %s83, 128, %s85, [#allocation12]
    $region25: #{tpu_custom_call.1} parent=1 // pred_fallthru
      _
    // Predicated region
    $region26: #{tpu_custom_call.1} parent=1 // pred_check
      _
    $region27: #{tpu_custom_call.1} parent=1 // pred_check_branch
      %89 = sbr.rel (0) target = $region29
    $region28: #{tpu_custom_call.1} parent=1 // pred_region
      %91 = dma.done [#allocation3], 128
    $region29: #{tpu_custom_call.1} parent=1 // pred_fallthru
      _
    // Predicated region
    $region30: #{tpu_custom_call.1} parent=1 // pred_check
      _
    $region31: #{tpu_custom_call.1} parent=1 // pred_check_branch
      %93 = sbr.rel (0) target = $region33
    $region32: #{tpu_custom_call.1} parent=1 // pred_region
      %95 = dma.done [#allocation6], 128
    $region33: #{tpu_custom_call.1} parent=1 // pred_fallthru
      _
    // Predicated region
    $region34: #{tpu_custom_call.1} parent=1 // pred_check
      _
    $region35: #{tpu_custom_call.1} parent=1 // pred_check_branch
      %97 = sbr.rel (0) target = $region37
    $region36: #{tpu_custom_call.1} parent=1 // pred_region
      %99 = dma.done [#allocation6], 256
    $region37: #{tpu_custom_call.1} parent=1 // pred_fallthru
      _
    // Predicated region
    $region38: #{tpu_custom_call.1} parent=1 // pred_check
      _
    $region39: #{tpu_custom_call.1} parent=1 // pred_check_branch
      %101 = sbr.rel (0) target = $region41
    $region40: #{tpu_custom_call.1} parent=1 // pred_region
      %103 = dma.done [#allocation9], 2048
    $region41: #{tpu_custom_call.1} parent=1 // pred_fallthru
      _
    // Predicated region
    $region42: #{tpu_custom_call.1} parent=1 // pred_check
      _
    $region43: #{tpu_custom_call.1} parent=1 // pred_check_branch
      %105 = sbr.rel (0) target = $region45
    $region44: #{tpu_custom_call.1} parent=1 // pred_region
      %107 = dma.done [#allocation9], 512
    $region45: #{tpu_custom_call.1} parent=1 // pred_fallthru
      _
    // Predicated region
    $region46: #{tpu_custom_call.1} parent=1 // pred_check
      _
    $region47: #{tpu_custom_call.1} parent=1 // pred_check_branch
      %109 = sbr.rel (0) target = $region49
    $region48: #{tpu_custom_call.1} parent=1 // pred_region
      %111 = dma.done [#allocation12], 128
    $region49: #{tpu_custom_call.1} parent=1 // pred_fallthru
      _
    %v113 = vld [vmem:[#allocation2] sm:$0xff]
    %v114 = vld [vmem:[#allocation5] sm:$0xff]
    %v115 = vld [vmem:[#allocation11] sm:$0x77]
    %v116 = vpack.c.bf16 %v113, %v113
    %v117 = vld [vmem:[#allocation7] sm:$0xf]
    %v118 = vld [vmem:[#allocation7 + $0x4] sm:$0xf]
    %v119 = vld [vmem:[#allocation7 + $0x8] sm:$0xf]
    %v120 = vld [vmem:[#allocation7 + $0xc] sm:$0xf]
    %v121 = vperm.slane %v115, 0
    %v126 = vunpack.c.l.b16 %v117
    %v127 = vunpack.c.l.b16 %v118
    %v128 = vunpack.c.l.b16 %v119
    %v129 = vunpack.c.l.b16 %v120
    %v130 = vpack.c.b16 %v127, %v126
    %v131 = vpack.c.b16 %v129, %v128
    %vm134 = vcmask 261120
    %v136 = vsel %vm134, %v116, 0
    %138 = vmatpush.bf16.msra.mxu0 0
    %139 = vmatpush.bf16.msra.mxu0 0
    %140 = vmatpush.bf16.msra.mxu0 0
    %141 = vmatpush.bf16.msra.mxu0 0
    %142 = vmatpush.bf16.msra.mxu0 0
    %143 = vmatpush.bf16.msra.mxu0 0
    %144 = vmatpush.bf16.msra.mxu0 %v131
    %145 = vmatpush.bf16.msra.mxu0 %v130
    %146 = vmatmul.bf16.gmra.mxu0 %v136
    %v147 = vpop.f32.mrf.mxu0
    %v148 = vadd.f32 %v121, %v147
    %v149 = vpop.f32.mrf.mxu0
    %150 = vdwg.mxu0
    %v151 = vmax.f32 %v148, 0.0
    %153 = vrot.lane.b32.xlu0 %v114, 64
    %v154 = vpop.permute.xlu0 %153
    %vm156 = vcmask 523264
    %v157 = vsel %vm156, %v151, %v154
    %v158 = vpack.c.bf16 %v157, %v157
    %v159 = vld [vmem:[#allocation8] sm:$0xff]
    %v160 = vld [vmem:[#allocation8 + $0x8] sm:$0xff]
    %v161 = vld [vmem:[#allocation8 + $0x10] sm:$0xff]
    %v162 = vld [vmem:[#allocation8 + $0x18] sm:$0xff]
    %v163 = vld [vmem:[#allocation8 + $0x20] sm:$0xff]
    %v164 = vld [vmem:[#allocation8 + $0x28] sm:$0xff]
    %v165 = vld [vmem:[#allocation8 + $0x30] sm:$0xff]
    %v166 = vld [vmem:[#allocation8 + $0x38] sm:$0xff]
    %v167 = vld [vmem:[#allocation8 + $0x40] sm:$0xff]
    %v168 = vld [vmem:[#allocation8 + $0x48] sm:$0xff]
    %v169 = vld [vmem:[#allocation8 + $0x50] sm:$0xff]
    %v170 = vld [vmem:[#allocation8 + $0x58] sm:$0xff]
    %v171 = vld [vmem:[#allocation8 + $0x60] sm:$0xff]
    %v172 = vld [vmem:[#allocation8 + $0x68] sm:$0xff]
    %v173 = vld [vmem:[#allocation8 + $0x70] sm:$0xff]
    %v174 = vld [vmem:[#allocation8 + $0x78] sm:$0xff]
    %v176 = vperm.slane %v115, 1
    %v177 = vperm.slane %v115, 5
    %v180 = vperm.slane %v176, 1
    %v181 = vperm.slane %v177, 1
    %v198 = vunpack.c.l.b16 %v159
    %v199 = vunpack.c.h.b16 %v159
    %v200 = vunpack.c.l.b16 %v160
    %v201 = vunpack.c.h.b16 %v160
    %v202 = vunpack.c.l.b16 %v161
    %v203 = vunpack.c.h.b16 %v161
    %v204 = vunpack.c.l.b16 %v162
    %v205 = vunpack.c.h.b16 %v162
    %v206 = vunpack.c.l.b16 %v163
    %v207 = vunpack.c.h.b16 %v163
    %v208 = vunpack.c.l.b16 %v164
    %v209 = vunpack.c.h.b16 %v164
    %v210 = vunpack.c.l.b16 %v165
    %v211 = vunpack.c.h.b16 %v165
    %v212 = vunpack.c.l.b16 %v166
    %v213 = vunpack.c.h.b16 %v166
    %v214 = vunpack.c.l.b16 %v167
    %v215 = vunpack.c.h.b16 %v167
    %v216 = vunpack.c.l.b16 %v168
    %v217 = vunpack.c.h.b16 %v168
    %v218 = vunpack.c.l.b16 %v169
    %v219 = vunpack.c.h.b16 %v169
    %v220 = vunpack.c.l.b16 %v170
    %v221 = vunpack.c.h.b16 %v170
    %v222 = vunpack.c.l.b16 %v171
    %v223 = vunpack.c.h.b16 %v171
    %v224 = vunpack.c.l.b16 %v172
    %v225 = vunpack.c.h.b16 %v172
    %v226 = vunpack.c.l.b16 %v173
    %v227 = vunpack.c.h.b16 %v173
    %v228 = vunpack.c.l.b16 %v174
    %v229 = vunpack.c.h.b16 %v174
    %v230 = vpack.c.b16 %v200, %v198
    %v231 = vpack.c.b16 %v201, %v199
    %v232 = vpack.c.b16 %v204, %v202
    %v233 = vpack.c.b16 %v205, %v203
    %v234 = vpack.c.b16 %v208, %v206
    %v235 = vpack.c.b16 %v209, %v207
    %v236 = vpack.c.b16 %v212, %v210
    %v237 = vpack.c.b16 %v213, %v211
    %v238 = vpack.c.b16 %v216, %v214
    %v239 = vpack.c.b16 %v217, %v215
    %v240 = vpack.c.b16 %v220, %v218
    %v241 = vpack.c.b16 %v221, %v219
    %v242 = vpack.c.b16 %v224, %v222
    %v243 = vpack.c.b16 %v225, %v223
    %v244 = vpack.c.b16 %v228, %v226
    %v245 = vpack.c.b16 %v229, %v227
    %262 = vmatpush.bf16.msra.mxu0 %v244
    %263 = vmatpush.bf16.msra.mxu0 %v242
    %264 = vmatpush.bf16.msra.mxu0 %v240
    %265 = vmatpush.bf16.msra.mxu0 %v238
    %266 = vmatpush.bf16.msra.mxu0 %v236
    %267 = vmatpush.bf16.msra.mxu0 %v234
    %268 = vmatpush.bf16.msra.mxu0 %v232
    %269 = vmatpush.bf16.msra.mxu0 %v230
    %270 = vmatmul.bf16.gmra.mxu0 %v158
    %v271 = vpop.f32.mrf.mxu0
    %v272 = vadd.f32 %v180, %v271
    %v273 = vpop.f32.mrf.mxu0
    %274 = vdwg.mxu0
    %275 = vmatpush.bf16.msra.mxu0 %v245
    %276 = vmatpush.bf16.msra.mxu0 %v243
    %277 = vmatpush.bf16.msra.mxu0 %v241
    %278 = vmatpush.bf16.msra.mxu0 %v239
    %279 = vmatpush.bf16.msra.mxu0 %v237
    %280 = vmatpush.bf16.msra.mxu0 %v235
    %281 = vmatpush.bf16.msra.mxu0 %v233
    %282 = vmatpush.bf16.msra.mxu0 %v231
    %283 = vmatmul.bf16.gmra.mxu0 %v158
    %v284 = vpop.f32.mrf.mxu0
    %v285 = vadd.f32 %v181, %v284
    %v286 = vpop.f32.mrf.mxu0
    %287 = vdwg.mxu0
    %v288 = vxor.u32 %v272, 2147483648
    %v289 = vmul.f32 %v288, 1.442695
    %v290 = vpow.pop %v289
    %v291 = vadd.f32 %v290, 1.0
    %v292 = vrcp.pop %v291
    %v293 = vmul.f32 %v291, %v292
    %v294 = vsub.f32 1.0, %v293
    %v295 = vmul.f32 %v292, %v294
    %v296 = vadd.f32 %v292, %v295
    %vm297 = vweird.f32 %v291
    %vm298 = vweird.f32 %v292
    %vm299 = vmor %vm297, %vm298
    %v300 = vsel %vm299, %v292, %v296
    %v301 = vand.u32 2147483647, %v291
    %vm302 = vcmp.eq.f32.partialorder %v301, 8.507059e+37
    %v303 = vand.u32 %v291, 2147483648
    %v304 = vor.u32 1.1754944e-38, %v303
    %v305 = vsel %vm302, %v304, %v300
    %v306 = vmul.f32 1.0, %v305
    %308 = vrot.lane.b32.xlu0 %v285, 64
    %v309 = vpop.permute.xlu0 %308
    %v311 = vmul.f32 %v306, %v309
    %v312 = vadd.f32 %v285, %v311
    %v313 = vtanh.pop %v312
    %v314 = vsub.f32 1.0, %v306
    %316 = vrot.lane.b32.xlu0 %v313, 64
    %v317 = vpop.permute.xlu0 %316
    %v319 = vmul.f32 %v314, %v317
    %v320 = vmul.f32 %v306, %v154
    %v321 = vadd.f32 %v319, %v320
    %v322 = vpack.c.bf16 %v321, %v321
    %v323 = vld [vmem:[#allocation10] sm:$0xf]
    %v324 = vld [vmem:[#allocation10 + $0x4] sm:$0xf]
    %v325 = vld [vmem:[#allocation10 + $0x8] sm:$0xf]
    %v326 = vld [vmem:[#allocation10 + $0xc] sm:$0xf]
    %v327 = vld [vmem:[#allocation10 + $0x10] sm:$0xf]
    %v328 = vld [vmem:[#allocation10 + $0x14] sm:$0xf]
    %v329 = vld [vmem:[#allocation10 + $0x18] sm:$0xf]
    %v330 = vld [vmem:[#allocation10 + $0x1c] sm:$0xf]
    %v331 = vperm.slane %v115, 2
    %333 = vrot.lane.b32.xlu0 %v322, 64
    %v334 = vpop.permute.xlu0 %333
    %v343 = vunpack.c.l.b16 %v323
    %v344 = vunpack.c.l.b16 %v324
    %v345 = vunpack.c.l.b16 %v325
    %v346 = vunpack.c.l.b16 %v326
    %v347 = vunpack.c.l.b16 %v327
    %v348 = vunpack.c.l.b16 %v328
    %v349 = vunpack.c.l.b16 %v329
    %v350 = vunpack.c.l.b16 %v330
    %v351 = vpack.c.b16 %v344, %v343
    %v352 = vpack.c.b16 %v346, %v345
    %v353 = vpack.c.b16 %v348, %v347
    %v354 = vpack.c.b16 %v350, %v349
    %v360 = vsel %vm156, %v334, 0
    %362 = vmatpush.bf16.msra.mxu0 0
    %363 = vmatpush.bf16.msra.mxu0 0
    %364 = vmatpush.bf16.msra.mxu0 0
    %365 = vmatpush.bf16.msra.mxu0 0
    %366 = vmatpush.bf16.msra.mxu0 %v354
    %367 = vmatpush.bf16.msra.mxu0 %v353
    %368 = vmatpush.bf16.msra.mxu0 %v352
    %369 = vmatpush.bf16.msra.mxu0 %v351
    %370 = vmatmul.bf16.gmra.mxu0 %v360
    %v371 = vpop.f32.mrf.mxu0
    %v372 = vadd.f32 %v331, %v371
    %v373 = vpop.f32.mrf.mxu0
    %374 = vdwg.mxu0
    %376 = vrot.lane.b32.xlu0 %v321, 64
    %v377 = vpop.permute.xlu0 %376
    %v379 = vsel %vm156, %v377, 0.0
    %380 = vst [vmem:[#allocation13] sm:$0xff] %v372
    %381 = vst [vmem:[#allocation13 + $0x8] sm:$0xff] %v379
    // Predicated region
    $region50: #{tpu_custom_call.1} parent=1 // pred_check
      _
    $region51: #{tpu_custom_call.1} parent=1 // pred_check_branch
      %383 = sbr.rel (0) target = $region53
    $region52: #{tpu_custom_call.1} parent=1 // pred_region
      %385 = vsyncadd [#allocation4], 0
      %s387 = sshll.u32 [#allocation13], 4
      %s388 = int_to_ptr.vmem [resolvable:$true] %s387
      %s389 = sshll.u32 %s6, 4
      %s390 = int_to_ptr.hbm [resolvable:$true] %s389
      %392 = dma.vmem_to_hbm [thread:$0]  %s388, 256, %s390, [#allocation4]
    $region53: #{tpu_custom_call.1} parent=1 // pred_fallthru
      _
    // Predicated region
    $region54: #{tpu_custom_call.1} parent=1 // pred_check
      _
    $region55: #{tpu_custom_call.1} parent=1 // pred_check_branch
      %394 = sbr.rel (0) target = $region57
    $region56: #{tpu_custom_call.1} parent=1 // pred_region
      %396 = dma.done [#allocation4], 256
    $region57: #{tpu_custom_call.1} parent=1 // pred_fallthru
      _
    %397 = vsyncpa [#allocation3], 1
    %398 = vsyncpa [#allocation6], 1
    %399 = vsyncpa [#allocation9], 1
    %400 = vsyncpa [#allocation12], 1
    %401 = vsyncpa [#allocation4], 1

</llo_original>
